<compile_context>
chip_gen: v5e
topology: v5e:2x2
jax: 0.10.0
libtpu: 0.0.40
codegen_flags: <defaults>
</compile_context>

<pallas_src>
import functools

import jax
import jax.numpy as jnp
from jax.experimental import pallas as pl
from jax.experimental.pallas import tpu as pltpu

# --- DFDetector hyper-parameters (module defaults) ---------------------------
MIN_CONN = 1
MAX_CONN = 16
THRESHOLD = 0.1          # DFDetector default threshold
POWER = 2                # DFDetector default power
DF_EPS = 1e-8

# VMEM budgeting.  48 MiB scoped limit is safe on v5e/v6e (128 MiB physical)
# and leaves headroom on v7x (64 MiB physical).  The fused path is only taken
# when one f32 (C, H, W) image is <= _FUSED_IMAGE_BYTES_MAX so that the
# double-buffered input + in-kernel temporaries fit comfortably.
_VMEM_LIMIT = 48 * 1024 * 1024
_FUSED_IMAGE_BYTES_MAX = 2 * 1024 * 1024
_BLOCK_BUDGET_BYTES = 4 * 1024 * 1024      # per-input-block budget, row-tiled fallback


# ======================= in-kernel bilinear down+up ==========================

def _shift_rep(a, off, axis):
    """a shifted so out[i] = a[i + off], with |off| edge entries replicated."""
    n = a.shape[axis]
    k = abs(off)
    if k >= n:
        return a
    if off > 0:
        body = jax.lax.slice_in_dim(a, k, n, axis=axis)
        edge = jax.lax.slice_in_dim(a, n - k, n, axis=axis)
        return jnp.concatenate([body, edge], axis=axis)
    edge = jax.lax.slice_in_dim(a, 0, k, axis=axis)
    body = jax.lax.slice_in_dim(a, 0, n - k, axis=axis)
    return jnp.concatenate([edge, body], axis=axis)


def _axis_downup(v, axis):
    """Bilinear 0.5x down + 2x up (align_corners=False) along one spatial axis
    of a (C, H, W) value, fused on the fine grid:
        c[j]      = (v[2j] + v[2j+1]) / 2
        out[2j]   = 0.75*c[j] + 0.25*c[max(j-1, 0)]
        out[2j+1] = 0.75*c[j] + 0.25*c[min(j+1, J-1)]
    Implemented as pair-sum s (= 2*c broadcast to the fine grid) plus the
    clamped neighbouring pair-sum selected by an even/odd mask."""
    h, w = v.shape[-2], v.shape[-1]
    dim2d = axis - (v.ndim - 2)            # 0 -> sublane (H) axis, 1 -> lane (W) axis
    even = (jax.lax.broadcasted_iota(jnp.int32, (h, w), dim2d) % 2) == 0
    s = v + jnp.where(even, _shift_rep(v, +1, axis), _shift_rep(v, -1, axis))
    nbr = jnp.where(even, _shift_rep(s, -2, axis), _shift_rep(s, +2, axis))
    return 0.375 * s + 0.125 * nbr


def _connections_from_df(df, dmin, dmax):
    """normalise / power / threshold / round / clamp -> connection counts."""
    inv = 1.0 / (dmax - dmin + DF_EPS)                 # one divide, then multiplies
    dfn = (df - dmin) * inv
    dfp = dfn * dfn if POWER == 2 else dfn ** POWER
    mask = (dfp > THRESHOLD).astype(jnp.float32)
    above = jnp.maximum(jnp.round(dfp * float(MAX_CONN - MIN_CONN)), 0.0)
    return float(MIN_CONN) + above * mask


# ===================== fused single-pass kernel (primary) ====================

def _fused_kernel(x_ref, df_ref, conn_ref):
    """One batch image per grid step: resample round-trip, df, min/max,
    normalise, threshold, round -- x read from HBM exactly once."""
    x = x_ref[0].astype(jnp.float32)                   # (C, H, W), in-kernel upcast
    xdu = _axis_downup(_axis_downup(x, 2), 1)          # separable down+up, W then H
    df = jnp.sum(jnp.abs(x - xdu), axis=0)             # (H, W) sublane/lane dense
    df_ref[0, 0] = df

    dmin = jnp.min(jnp.min(df, axis=1, keepdims=True), axis=0, keepdims=True)
    dmax = jnp.max(jnp.max(df, axis=1, keepdims=True), axis=0, keepdims=True)
    conn_ref[0, 0] = _connections_from_df(df, dmin, dmax).astype(conn_ref.dtype)


def _fused_forward(x):
    B, C, H, W = x.shape
    df, conn = pl.pallas_call(
        _fused_kernel,
        out_shape=(jax.ShapeDtypeStruct((B, 1, H, W), jnp.float32),
                   jax.ShapeDtypeStruct((B, 1, H, W), jnp.float32)),
        grid=(B,),
        in_specs=[pl.BlockSpec((1, C, H, W), lambda b: (b, 0, 0, 0))],
        out_specs=(pl.BlockSpec((1, 1, H, W), lambda b: (b, 0, 0, 0)),
                   pl.BlockSpec((1, 1, H, W), lambda b: (b, 0, 0, 0))),
        compiler_params=pltpu.CompilerParams(
            dimension_semantics=("parallel",),
            vmem_limit_bytes=_VMEM_LIMIT),
    )(x)
    return df, conn


# =============== row-tiled fallback for very large images ====================

def _df_minmax_kernel(diff_ref, df_ref, mn_ref, mx_ref):
    """df = |diff|.sum(channel) for one (batch, row-tile) block, plus per-batch
    running min/max accumulated across the row-tile ('arbitrary') axis."""
    t = pl.program_id(1)
    df = jnp.sum(jnp.abs(diff_ref[0]), axis=0)         # (SH, W) sublane-dense
    df_ref[0, 0] = df

    tmin = jnp.min(jnp.min(df, axis=1, keepdims=True), axis=0, keepdims=True)
    tmax = jnp.max(jnp.max(df, axis=1, keepdims=True), axis=0, keepdims=True)

    @pl.when(t == 0)
    def _init():
        mn_ref[0] = tmin
        mx_ref[0] = tmax

    @pl.when(t > 0)
    def _update():
        mn_ref[0] = jnp.minimum(mn_ref[0], tmin)
        mx_ref[0] = jnp.maximum(mx_ref[0], tmax)


def _connections_kernel(df_ref, mn_ref, mx_ref, conn_ref):
    # TODO(synk): df_min/df_max could ride in SMEM / scalar-prefetch instead of
    # (1,1,1) VMEM blocks; kept as VMEM blocks (proven-clean pattern).
    df = df_ref[0, 0]                                   # (SH, W)
    conn_ref[0, 0] = _connections_from_df(df, mn_ref[0], mx_ref[0]).astype(conn_ref.dtype)


def _bilinear_down2(x_nchw):
    """F.interpolate(scale_factor=0.5, bilinear, align_corners=False) == 2x2 mean."""
    B, C, H, W = x_nchw.shape
    return x_nchw.reshape(B, C, H // 2, 2, W // 2, 2).mean(axis=(3, 5))


def _up2_along(x, axis):
    """2x bilinear upsample (align_corners=False) along one axis."""
    n = x.shape[axis]

    def take(sl):
        idx = [slice(None)] * x.ndim
        idx[axis] = sl
        return x[tuple(idx)]

    left = jnp.concatenate([take(slice(0, 1)), take(slice(0, n - 1))], axis=axis)
    right = jnp.concatenate([take(slice(1, n)), take(slice(n - 1, n))], axis=axis)
    even = 0.75 * x + 0.25 * left
    odd = 0.75 * x + 0.25 * right
    stacked = jnp.stack([even, odd], axis=axis + 1)
    out_shape = list(x.shape)
    out_shape[axis] = 2 * n
    return stacked.reshape(out_shape)


def _bilinear_down_up(x_nchw):
    """x -> interpolate(0.5x) -> interpolate back to (H, W), align_corners=False."""
    return _up2_along(_up2_along(_bilinear_down2(x_nchw), 2), 3)


def _choose_row_tile(h, w, c):
    """Largest multiple-of-8 row tile dividing H whose (C, SH, W) f32 block fits
    the per-block VMEM budget (falls back to the whole H if H % 8 != 0)."""
    if h % 8 != 0:
        return h
    bytes_per_row = 4 * max(c, 1) * max(w, 1)
    sh = max(8, (_BLOCK_BUDGET_BYTES // bytes_per_row) // 8 * 8)
    sh = min(sh, h)
    while h % sh != 0:
        sh -= 8
    return sh


def _fallback_forward(x, row_tile):
    B, C, H, W = x.shape
    xf = x.astype(jnp.float32)
    # Single XLA fusion produces diff; kernel 1 then reads one array, not two.
    diff = xf - _bilinear_down_up(xf)

    SH = _choose_row_tile(H, W, C) if row_tile is None else int(row_tile)
    assert H % SH == 0 and (SH % 8 == 0 or SH == H)
    nT = H // SH

    df, df_min, df_max = pl.pallas_call(
        _df_minmax_kernel,
        out_shape=(jax.ShapeDtypeStruct((B, 1, H, W), jnp.float32),
                   jax.ShapeDtypeStruct((B, 1, 1), jnp.float32),
                   jax.ShapeDtypeStruct((B, 1, 1), jnp.float32)),
        grid=(B, nT),
        in_specs=[pl.BlockSpec((1, C, SH, W), lambda b, t: (b, 0, t, 0))],
        out_specs=(pl.BlockSpec((1, 1, SH, W), lambda b, t: (b, 0, t, 0)),
                   pl.BlockSpec((1, 1, 1), lambda b, t: (b, 0, 0)),
                   pl.BlockSpec((1, 1, 1), lambda b, t: (b, 0, 0))),
        compiler_params=pltpu.CompilerParams(
            dimension_semantics=("parallel", "arbitrary"),
            vmem_limit_bytes=_VMEM_LIMIT),
    )(diff)

    conn = pl.pallas_call(
        _connections_kernel,
        out_shape=jax.ShapeDtypeStruct((B, 1, H, W), jnp.float32),
        grid=(B, nT),
        in_specs=[pl.BlockSpec((1, 1, SH, W), lambda b, t: (b, 0, t, 0)),
                  pl.BlockSpec((1, 1, 1), lambda b, t: (b, 0, 0)),
                  pl.BlockSpec((1, 1, 1), lambda b, t: (b, 0, 0))],
        out_specs=pl.BlockSpec((1, 1, SH, W), lambda b, t: (b, 0, t, 0)),
        compiler_params=pltpu.CompilerParams(
            dimension_semantics=("parallel", "parallel"),
            vmem_limit_bytes=_VMEM_LIMIT),
    )(df, df_min, df_max)

    return df, conn


# ============================ public forward =================================

@functools.partial(jax.jit, static_argnames=("force_fallback", "row_tile"))
def df_detector_forward(x_nchw, force_fallback=False, row_tile=None):
    """Pallas implementation of DFDetector.forward.

    Returns (df_values, connections), both (B, 1, H, W) float32, matching the
    PyTorch module (per-batch min/max normalisation, power=2, threshold mask,
    round-half-to-even, clamp-min-0)."""
    B, C, H, W = x_nchw.shape
    assert H % 2 == 0 and W % 2 == 0, "bilinear 0.5x round-trip expects even H, W"

    per_image_bytes = 4 * C * H * W
    if force_fallback or per_image_bytes > _FUSED_IMAGE_BYTES_MAX:
        # Large images: row-tiled two-kernel path (diff produced by XLA).
        return _fallback_forward(x_nchw, row_tile)
    # Fused single-pass path; input stays in its native dtype (upcast in-kernel).
    return _fused_forward(x_nchw)


# ============================ pure-JAX reference =============================

def _df_detector_reference(x_nchw):
    B, C, H, W = x_nchw.shape
    x = x_nchw.astype(jnp.float32)
    xdu = _bilinear_down_up(x)
    df = jnp.abs(x - xdu).sum(axis=1, keepdims=True)
    df_min = df.reshape(B, -1).min(axis=1).reshape(B, 1, 1, 1)
    df_max = df.reshape(B, -1).max(axis=1).reshape(B, 1, 1, 1)
    dfn = (df - df_min) / (df_max - df_min + DF_EPS)
    dfp = dfn ** POWER
    mask = (dfp > THRESHOLD).astype(jnp.float32)
    above = jnp.maximum(jnp.round(dfp * (MAX_CONN - MIN_CONN)), 0.0)
    conn = MIN_CONN + above * mask
    return df, conn


if __name__ == "__main__":
    B, C, H, W = 2, 4, 16, 16
    key = jax.random.PRNGKey(0)
    x = jax.random.normal(key, (B, C, H, W), jnp.float32)

    df_ref, conn_ref = _df_detector_reference(x)

    # Fused single-pass path (default).
    df, conn = jax.block_until_ready(df_detector_forward(x))
    assert df.shape == (B, 1, H, W) and conn.shape == (B, 1, H, W)
    assert df.dtype == jnp.float32 and conn.dtype == jnp.float32
    assert float(jnp.max(jnp.abs(df - df_ref))) < 1e-5
    assert float(jnp.max(jnp.abs(conn - conn_ref))) < 1e-3

    # Row-tiled fallback path (large-image route); two row tiles per batch
    # exercise the cross-tile min/max accumulator.
    df2, conn2 = jax.block_until_ready(
        df_detector_forward(x, force_fallback=True, row_tile=8))
    assert float(jnp.max(jnp.abs(df2 - df_ref))) < 1e-5
    assert float(jnp.max(jnp.abs(conn2 - conn_ref))) < 1e-3

    print("KERNEL_OK")
</pallas_src>

<mosaic_0001>
module attributes {stable_mosaic.version = 11 : i64} {
  func.func @_fused_kernel(%arg0: i32, %arg1: memref<1x4x16x16xf32, #tpu.memory_space<vmem>>, %arg2: memref<1x1x16x16xf32, #tpu.memory_space<vmem>>, %arg3: memref<1x1x16x16xf32, #tpu.memory_space<vmem>>) attributes {dimension_semantics = [#tpu.dimension_semantics<parallel>], iteration_bounds = array<i64: 2>, scalar_prefetch = 0 : i64, scratch_operands = 0 : i64, tpu.core_type = #tpu.core_type<tc>, window_params = [{transform_indices = @transform_0, window_bounds = array<i64: 1, 4, 16, 16>}, {transform_indices = @transform_1, window_bounds = array<i64: 1, 1, 16, 16>}, {transform_indices = @transform_2, window_bounds = array<i64: 1, 1, 16, 16>}]} {
    %c0 = arith.constant 0 : index
    %c0_0 = arith.constant 0 : index
    %c0_1 = arith.constant 0 : index
    %c0_2 = arith.constant 0 : index
    %0 = vector.load %arg1[%c0, %c0_0, %c0_1, %c0_2] : memref<1x4x16x16xf32, #tpu.memory_space<vmem>>, vector<1x4x16x16xf32>
    %1 = vector.shape_cast %0 : vector<1x4x16x16xf32> to vector<4x16x16xf32>
    %2 = tpu.iota {dimensions = array<i32: 1>} : vector<16x16xi32>
    %c2_i32 = arith.constant 2 : i32
    %c0_i32 = arith.constant 0 : i32
    %3 = arith.cmpi eq, %c2_i32, %c0_i32 : i32
    %c1_i32 = arith.constant 1 : i32
    %4 = arith.select %3, %c1_i32, %c2_i32 : i32
    %5 = vector.broadcast %4 : i32 to vector<16x16xi32>
    %6 = arith.remsi %2, %5 : vector<16x16xi32>
    %c0_i32_3 = arith.constant 0 : i32
    %7 = vector.broadcast %c0_i32_3 : i32 to vector<16x16xi32>
    %8 = arith.cmpi ne, %6, %7 : vector<16x16xi32>
    %c0_i32_4 = arith.constant 0 : i32
    %9 = vector.broadcast %c0_i32_4 : i32 to vector<16x16xi32>
    %10 = arith.cmpi slt, %6, %9 : vector<16x16xi32>
    %c0_i32_5 = arith.constant 0 : i32
    %11 = arith.cmpi slt, %4, %c0_i32_5 : i32
    %12 = vector.broadcast %11 : i1 to vector<16x16xi1>
    %13 = vector.broadcast %12 : vector<16x16xi1> to vector<16x16xi1>
    %14 = arith.xori %10, %13 : vector<16x16xi1>
    %15 = arith.andi %14, %8 : vector<16x16xi1>
    %16 = vector.broadcast %4 : i32 to vector<16x16xi32>
    %17 = arith.addi %6, %16 : vector<16x16xi32>
    %18 = arith.select %15, %17, %6 : vector<16x16xi1>, vector<16x16xi32>
    %c0_i32_6 = arith.constant 0 : i32
    %19 = vector.broadcast %c0_i32_6 : i32 to vector<16x16xi32>
    %20 = arith.cmpi eq, %18, %19 : vector<16x16xi32>
    %21 = vector.extract_strided_slice %1 {offsets = [0, 0, 1], sizes = [4, 16, 15], strides = [1, 1, 1]} : vector<4x16x16xf32> to vector<4x16x15xf32>
    %22 = vector.extract_strided_slice %1 {offsets = [0, 0, 15], sizes = [4, 16, 1], strides = [1, 1, 1]} : vector<4x16x16xf32> to vector<4x16x1xf32>
    %23 = tpu.concatenate %21, %22 in 2 : vector<4x16x15xf32>, vector<4x16x1xf32> -> vector<4x16x16xf32>
    %24 = vector.extract_strided_slice %1 {offsets = [0, 0, 0], sizes = [4, 16, 1], strides = [1, 1, 1]} : vector<4x16x16xf32> to vector<4x16x1xf32>
    %25 = vector.extract_strided_slice %1 {offsets = [0, 0, 0], sizes = [4, 16, 15], strides = [1, 1, 1]} : vector<4x16x16xf32> to vector<4x16x15xf32>
    %26 = tpu.concatenate %24, %25 in 2 : vector<4x16x1xf32>, vector<4x16x15xf32> -> vector<4x16x16xf32>
    %27 = vector.shape_cast %20 : vector<16x16xi1> to vector<1x16x16xi1>
    %28 = vector.broadcast %27 : vector<1x16x16xi1> to vector<4x16x16xi1>
    %29 = arith.select %28, %23, %26 : vector<4x16x16xi1>, vector<4x16x16xf32>
    %30 = arith.addf %1, %29 : vector<4x16x16xf32>
    %31 = vector.extract_strided_slice %30 {offsets = [0, 0, 0], sizes = [4, 16, 2], strides = [1, 1, 1]} : vector<4x16x16xf32> to vector<4x16x2xf32>
    %32 = vector.extract_strided_slice %30 {offsets = [0, 0, 0], sizes = [4, 16, 14], strides = [1, 1, 1]} : vector<4x16x16xf32> to vector<4x16x14xf32>
    %33 = tpu.concatenate %31, %32 in 2 : vector<4x16x2xf32>, vector<4x16x14xf32> -> vector<4x16x16xf32>
    %34 = vector.extract_strided_slice %30 {offsets = [0, 0, 2], sizes = [4, 16, 14], strides = [1, 1, 1]} : vector<4x16x16xf32> to vector<4x16x14xf32>
    %35 = vector.extract_strided_slice %30 {offsets = [0, 0, 14], sizes = [4, 16, 2], strides = [1, 1, 1]} : vector<4x16x16xf32> to vector<4x16x2xf32>
    %36 = tpu.concatenate %34, %35 in 2 : vector<4x16x14xf32>, vector<4x16x2xf32> -> vector<4x16x16xf32>
    %37 = vector.shape_cast %20 : vector<16x16xi1> to vector<1x16x16xi1>
    %38 = vector.broadcast %37 : vector<1x16x16xi1> to vector<4x16x16xi1>
    %39 = arith.select %38, %33, %36 : vector<4x16x16xi1>, vector<4x16x16xf32>
    %cst = arith.constant 3.750000e-01 : f32
    %40 = vector.broadcast %cst : f32 to vector<4x16x16xf32>
    %41 = arith.mulf %40, %30 : vector<4x16x16xf32>
    %cst_7 = arith.constant 1.250000e-01 : f32
    %42 = vector.broadcast %cst_7 : f32 to vector<4x16x16xf32>
    %43 = arith.mulf %42, %39 : vector<4x16x16xf32>
    %44 = arith.addf %41, %43 : vector<4x16x16xf32>
    %45 = tpu.iota {dimensions = array<i32: 0>} : vector<16x16xi32>
    %c2_i32_8 = arith.constant 2 : i32
    %c0_i32_9 = arith.constant 0 : i32
    %46 = arith.cmpi eq, %c2_i32_8, %c0_i32_9 : i32
    %c1_i32_10 = arith.constant 1 : i32
    %47 = arith.select %46, %c1_i32_10, %c2_i32_8 : i32
    %48 = vector.broadcast %47 : i32 to vector<16x16xi32>
    %49 = arith.remsi %45, %48 : vector<16x16xi32>
    %c0_i32_11 = arith.constant 0 : i32
    %50 = vector.broadcast %c0_i32_11 : i32 to vector<16x16xi32>
    %51 = arith.cmpi ne, %49, %50 : vector<16x16xi32>
    %c0_i32_12 = arith.constant 0 : i32
    %52 = vector.broadcast %c0_i32_12 : i32 to vector<16x16xi32>
    %53 = arith.cmpi slt, %49, %52 : vector<16x16xi32>
    %c0_i32_13 = arith.constant 0 : i32
    %54 = arith.cmpi slt, %47, %c0_i32_13 : i32
    %55 = vector.broadcast %54 : i1 to vector<16x16xi1>
    %56 = vector.broadcast %55 : vector<16x16xi1> to vector<16x16xi1>
    %57 = arith.xori %53, %56 : vector<16x16xi1>
    %58 = arith.andi %57, %51 : vector<16x16xi1>
    %59 = vector.broadcast %47 : i32 to vector<16x16xi32>
    %60 = arith.addi %49, %59 : vector<16x16xi32>
    %61 = arith.select %58, %60, %49 : vector<16x16xi1>, vector<16x16xi32>
    %c0_i32_14 = arith.constant 0 : i32
    %62 = vector.broadcast %c0_i32_14 : i32 to vector<16x16xi32>
    %63 = arith.cmpi eq, %61, %62 : vector<16x16xi32>
    %64 = vector.extract_strided_slice %44 {offsets = [0, 1, 0], sizes = [4, 15, 16], strides = [1, 1, 1]} : vector<4x16x16xf32> to vector<4x15x16xf32>
    %65 = vector.extract_strided_slice %44 {offsets = [0, 15, 0], sizes = [4, 1, 16], strides = [1, 1, 1]} : vector<4x16x16xf32> to vector<4x1x16xf32>
    %66 = tpu.concatenate %64, %65 in 1 : vector<4x15x16xf32>, vector<4x1x16xf32> -> vector<4x16x16xf32>
    %67 = vector.extract_strided_slice %44 {offsets = [0, 0, 0], sizes = [4, 1, 16], strides = [1, 1, 1]} : vector<4x16x16xf32> to vector<4x1x16xf32>
    %68 = vector.extract_strided_slice %44 {offsets = [0, 0, 0], sizes = [4, 15, 16], strides = [1, 1, 1]} : vector<4x16x16xf32> to vector<4x15x16xf32>
    %69 = tpu.concatenate %67, %68 in 1 : vector<4x1x16xf32>, vector<4x15x16xf32> -> vector<4x16x16xf32>
    %70 = vector.shape_cast %63 : vector<16x16xi1> to vector<1x16x16xi1>
    %71 = vector.broadcast %70 : vector<1x16x16xi1> to vector<4x16x16xi1>
    %72 = arith.select %71, %66, %69 : vector<4x16x16xi1>, vector<4x16x16xf32>
    %73 = arith.addf %44, %72 : vector<4x16x16xf32>
    %74 = vector.extract_strided_slice %73 {offsets = [0, 0, 0], sizes = [4, 2, 16], strides = [1, 1, 1]} : vector<4x16x16xf32> to vector<4x2x16xf32>
    %75 = vector.extract_strided_slice %73 {offsets = [0, 0, 0], sizes = [4, 14, 16], strides = [1, 1, 1]} : vector<4x16x16xf32> to vector<4x14x16xf32>
    %76 = tpu.concatenate %74, %75 in 1 : vector<4x2x16xf32>, vector<4x14x16xf32> -> vector<4x16x16xf32>
    %77 = vector.extract_strided_slice %73 {offsets = [0, 2, 0], sizes = [4, 14, 16], strides = [1, 1, 1]} : vector<4x16x16xf32> to vector<4x14x16xf32>
    %78 = vector.extract_strided_slice %73 {offsets = [0, 14, 0], sizes = [4, 2, 16], strides = [1, 1, 1]} : vector<4x16x16xf32> to vector<4x2x16xf32>
    %79 = tpu.concatenate %77, %78 in 1 : vector<4x14x16xf32>, vector<4x2x16xf32> -> vector<4x16x16xf32>
    %80 = vector.shape_cast %63 : vector<16x16xi1> to vector<1x16x16xi1>
    %81 = vector.broadcast %80 : vector<1x16x16xi1> to vector<4x16x16xi1>
    %82 = arith.select %81, %76, %79 : vector<4x16x16xi1>, vector<4x16x16xf32>
    %cst_15 = arith.constant 3.750000e-01 : f32
    %83 = vector.broadcast %cst_15 : f32 to vector<4x16x16xf32>
    %84 = arith.mulf %83, %73 : vector<4x16x16xf32>
    %cst_16 = arith.constant 1.250000e-01 : f32
    %85 = vector.broadcast %cst_16 : f32 to vector<4x16x16xf32>
    %86 = arith.mulf %85, %82 : vector<4x16x16xf32>
    %87 = arith.addf %84, %86 : vector<4x16x16xf32>
    %88 = arith.subf %1, %87 : vector<4x16x16xf32>
    %89 = math.absf %88 : vector<4x16x16xf32>
    %cst_17 = arith.constant dense<0.000000e+00> : vector<16x16xf32>
    %90 = vector.multi_reduction <add>, %89, %cst_17 [0] : vector<4x16x16xf32> to vector<16x16xf32>
    %c0_18 = arith.constant 0 : index
    %c0_19 = arith.constant 0 : index
    %c0_20 = arith.constant 0 : index
    %c0_21 = arith.constant 0 : index
    %91 = vector.load %arg2[%c0_18, %c0_19, %c0_20, %c0_21] : memref<1x1x16x16xf32, #tpu.memory_space<vmem>>, vector<1x1x16x16xf32>
    %92 = vector.shape_cast %91 : vector<1x1x16x16xf32> to vector<16x16xf32>
    %93 = vector.shape_cast %90 : vector<16x16xf32> to vector<1x1x16x16xf32>
    tpu.vector_store %arg2[%c0_18, %c0_19, %c0_20, %c0_21], %93 {strides = array<i32>} : memref<1x1x16x16xf32, #tpu.memory_space<vmem>>, vector<1x1x16x16xf32>,
    %cst_22 = arith.constant dense<0x7F800000> : vector<16xf32>
    %94 = vector.multi_reduction <minimumf>, %90, %cst_22 [1] : vector<16x16xf32> to vector<16xf32>
    %95 = vector.shape_cast %94 : vector<16xf32> to vector<16x1xf32>
    %cst_23 = arith.constant dense<0x7F800000> : vector<1xf32>
    %96 = vector.multi_reduction <minimumf>, %95, %cst_23 [0] : vector<16x1xf32> to vector<1xf32>
    %97 = vector.shape_cast %96 : vector<1xf32> to vector<1x1xf32>
    %cst_24 = arith.constant dense<0xFF800000> : vector<16xf32>
    %98 = vector.multi_reduction <maximumf>, %90, %cst_24 [1] : vector<16x16xf32> to vector<16xf32>
    %99 = vector.shape_cast %98 : vector<16xf32> to vector<16x1xf32>
    %cst_25 = arith.constant dense<0xFF800000> : vector<1xf32>
    %100 = vector.multi_reduction <maximumf>, %99, %cst_25 [0] : vector<16x1xf32> to vector<1xf32>
    %101 = vector.shape_cast %100 : vector<1xf32> to vector<1x1xf32>
    %102 = arith.subf %101, %97 : vector<1x1xf32>
    %cst_26 = arith.constant 9.99999993E-9 : f32
    %103 = vector.broadcast %cst_26 : f32 to vector<1x1xf32>
    %104 = arith.addf %102, %103 : vector<1x1xf32>
    %cst_27 = arith.constant 1.000000e+00 : f32
    %105 = vector.broadcast %cst_27 : f32 to vector<1x1xf32>
    %106 = arith.divf %105, %104 : vector<1x1xf32>
    %107 = vector.broadcast %97 : vector<1x1xf32> to vector<16x16xf32>
    %108 = arith.subf %90, %107 : vector<16x16xf32>
    %109 = vector.broadcast %106 : vector<1x1xf32> to vector<16x16xf32>
    %110 = arith.mulf %108, %109 : vector<16x16xf32>
    %111 = arith.mulf %110, %110 : vector<16x16xf32>
    %cst_28 = arith.constant 1.000000e-01 : f32
    %112 = vector.broadcast %cst_28 : f32 to vector<16x16xf32>
    %113 = arith.cmpf ogt, %111, %112 : vector<16x16xf32>
    %114 = arith.extui %113 : vector<16x16xi1> to vector<16x16xi32>
    %115 = arith.sitofp %114 : vector<16x16xi32> to vector<16x16xf32>
    %cst_29 = arith.constant 1.500000e+01 : f32
    %116 = vector.broadcast %cst_29 : f32 to vector<16x16xf32>
    %117 = arith.mulf %111, %116 : vector<16x16xf32>
    %118 = math.roundeven %117 : vector<16x16xf32>
    %cst_30 = arith.constant 0.000000e+00 : f32
    %119 = vector.broadcast %cst_30 : f32 to vector<16x16xf32>
    %120 = arith.maximumf %118, %119 : vector<16x16xf32>
    %121 = arith.mulf %120, %115 : vector<16x16xf32>
    %cst_31 = arith.constant 1.000000e+00 : f32
    %122 = vector.broadcast %cst_31 : f32 to vector<16x16xf32>
    %123 = arith.addf %122, %121 : vector<16x16xf32>
    %c0_32 = arith.constant 0 : index
    %c0_33 = arith.constant 0 : index
    %c0_34 = arith.constant 0 : index
    %c0_35 = arith.constant 0 : index
    %124 = vector.load %arg3[%c0_32, %c0_33, %c0_34, %c0_35] : memref<1x1x16x16xf32, #tpu.memory_space<vmem>>, vector<1x1x16x16xf32>
    %125 = vector.shape_cast %124 : vector<1x1x16x16xf32> to vector<16x16xf32>
    %126 = vector.shape_cast %123 : vector<16x16xf32> to vector<1x1x16x16xf32>
    tpu.vector_store %arg3[%c0_32, %c0_33, %c0_34, %c0_35], %126 {strides = array<i32>} : memref<1x1x16x16xf32, #tpu.memory_space<vmem>>, vector<1x1x16x16xf32>,
    return
  }
  func.func @transform_0(%arg0: i32) -> (i32, i32, i32, i32) {
    %c0_i32 = arith.constant 0 : i32
    %c0_i32_0 = arith.constant 0 : i32
    %c0_i32_1 = arith.constant 0 : i32
    %c0_i32_2 = arith.constant 0 : i32
    return %arg0, %c0_i32, %c0_i32_0, %c0_i32_1 : i32, i32, i32, i32
  }
  func.func @transform_1(%arg0: i32) -> (i32, i32, i32, i32) {
    %c0_i32 = arith.constant 0 : i32
    %c0_i32_0 = arith.constant 0 : i32
    %c0_i32_1 = arith.constant 0 : i32
    %c0_i32_2 = arith.constant 0 : i32
    return %arg0, %c0_i32, %c0_i32_0, %c0_i32_1 : i32, i32, i32, i32
  }
  func.func @transform_2(%arg0: i32) -> (i32, i32, i32, i32) {
    %c0_i32 = arith.constant 0 : i32
    %c0_i32_0 = arith.constant 0 : i32
    %c0_i32_1 = arith.constant 0 : i32
    %c0_i32_2 = arith.constant 0 : i32
    return %arg0, %c0_i32, %c0_i32_0, %c0_i32_1 : i32, i32, i32, i32
  }
}

</mosaic_0001>

<llo_original>
// kernel: df_detector_forward.1
$region0: #{df_detector_forward.1}
  #allocation0 [shape = 'u32[]', space=smem, size = 0x4, offset = 0x4, fixed_abs, tag = 'smem constant byte address 0x4 - core index']
  #allocation1 [shape = 'u32[72,128]{1,0:T(1,128)}', space=vmem, size = 0x9000, scoped, tag = 'internal scratch']
  %s0 = inlined_call_operand.hbm [shape: f32[2,4,16,16], index: 0, kind: input, shape index: {}]
  %s1 = inlined_call_operand.hbm [shape: f32[2,1,16,16], index: 1, kind: output, shape index: {0}]
  %s2 = inlined_call_operand.hbm [shape: f32[2,1,16,16], index: 2, kind: output, shape index: {1}]
  %3 = xla_tuple %s1, %s2
  %s4 = sld [smem:[#allocation0]]
  $region49: #{df_detector_forward.1} parent=0
    _
  %s6 = ssub.s32 1, %s4
  %s7 = scalar_select 0, %s6, %s4
  $region1: #{df_detector_forward.1} parent=0
    #allocation2 [shape = 'u8[65536]{0}', space=vmem, size = 0x10000, scoped, tag = 'input window, operand 0']
    #allocation3 [shape = 's32[2]{0}', space=sflag, size = 0x8, scoped, tag = 'scoped memory for df_detector_forward.1']
    #allocation4 [shape = 's32[2]{0}', space=sflag, size = 0x8, scoped, tag = 'scoped memory for df_detector_forward.1']
    #allocation5 [shape = 'u8[16384]{0}', space=vmem, size = 0x4000, scoped, tag = 'output window, operand 0']
    #allocation6 [shape = 'u8[16384]{0}', space=vmem, size = 0x4000, scoped, tag = 'output window, operand 1']
    #allocation7 [shape = 's32[2]{0}', space=sflag, size = 0x8, scoped, tag = 'scoped memory for df_detector_forward.1']
    %8 = vsyncpa [#allocation3], 0
    %s9 = scalar_lea.sflag [#allocation3], 1
    %10 = vsyncpa %s9, 0
    %11 = vsyncpa [#allocation4], 0
    %s12 = scalar_lea.sflag [#allocation4], 1
    %13 = vsyncpa %s12, 0
    %14 = vsyncpa [#allocation7], 0
    %s15 = scalar_lea.sflag [#allocation7], 1
    %16 = vsyncpa %s15, 0
    loop: start=0, step=1, limit=4
    $region2: #{df_detector_forward.1} parent=1 // loop_pre_header
      _
    $region3: #{df_detector_forward.1} parent=1 // loop_header
      %s18 = sphi 0, %s22
      %p19 = scmp.ge.s32.totalorder %s18, 4
      %s28 = sphi 0, %s30
      %s31 = sphi 0, %s28
      %s32 = sphi 0, %s31
      %s48 = sphi 0, %s32
      %s54 = sphi 0, %s56
      %s57 = sphi 0, %s54
      %s58 = sphi 0, %s57
      %s74 = sphi 0, %s58
      %s80 = sphi 0, %s82
      %s83 = sphi 0, %s80
      %s84 = sphi 0, %s83
      %s100 = sphi 0, %s84
    $region4: #{df_detector_forward.1} parent=1 // loop_header_branch
      %21 = sbr.rel (%p19) target = $region8
    $region5: #{df_detector_forward.1} parent=1 // loop_body
      %s23 = ssub.s32 %s18, 1
      %s24 = ssub.s32 %s18, 2
      %s25 = sadd.s32 %s18, 1
      %s26 = ssub.s32 %s18, %s25
      %p27 = scmp.eq.s32.totalorder %s26, 0
      %s29 = sadd.s32 %s28, 1
      %s30 = scalar_select %p27, %s28, %s29
      %p33 = pneg %p27
      %p34 = scmp.eq.s32.totalorder %s18, 1
      %p35 = por %p33, %p34
      %p36 = scmp.ne.s32.totalorder %s28, %s31
      %p37 = scmp.eq.s32.totalorder %s18, 0
      %p38 = por %p36, %p37
      %p39 = scmp.ne.s32.totalorder %s28, %s31
      %p40 = scmp.eq.s32.totalorder %s23, 1
      %p41 = por %p39, %p40
      %p42 = scmp.ne.s32.totalorder %s31, %s32
      %p43 = scmp.eq.s32.totalorder %s23, 0
      %p44 = por %p42, %p43
      %p45 = scmp.ne.s32.totalorder %s31, %s32
      %p46 = scmp.eq.s32.totalorder %s24, 1
      %p47 = por %p45, %p46
      %p49 = scmp.ne.s32.totalorder %s32, %s48
      %p50 = scmp.eq.s32.totalorder %s24, 0
      %p51 = por %p49, %p50
      %s52 = ssub.s32 %s18, %s25
      %p53 = scmp.eq.s32.totalorder %s52, 0
      %s55 = sadd.s32 %s54, 1
      %s56 = scalar_select %p53, %s54, %s55
      %p59 = pneg %p53
      %p60 = scmp.eq.s32.totalorder %s18, 1
      %p61 = por %p59, %p60
      %p62 = scmp.ne.s32.totalorder %s54, %s57
      %p63 = scmp.eq.s32.totalorder %s18, 0
      %p64 = por %p62, %p63
      %p65 = scmp.ne.s32.totalorder %s54, %s57
      %p66 = scmp.eq.s32.totalorder %s23, 1
      %p67 = por %p65, %p66
      %p68 = scmp.ne.s32.totalorder %s57, %s58
      %p69 = scmp.eq.s32.totalorder %s23, 0
      %p70 = por %p68, %p69
      %p71 = scmp.ne.s32.totalorder %s57, %s58
      %p72 = scmp.eq.s32.totalorder %s24, 1
      %p73 = por %p71, %p72
      %p75 = scmp.ne.s32.totalorder %s58, %s74
      %p76 = scmp.eq.s32.totalorder %s24, 0
      %p77 = por %p75, %p76
      %s78 = ssub.s32 %s18, %s25
      %p79 = scmp.eq.s32.totalorder %s78, 0
      %s81 = sadd.s32 %s80, 1
      %s82 = scalar_select %p79, %s80, %s81
      %p85 = pneg %p79
      %p86 = scmp.eq.s32.totalorder %s18, 1
      %p87 = por %p85, %p86
      %p88 = scmp.ne.s32.totalorder %s80, %s83
      %p89 = scmp.eq.s32.totalorder %s18, 0
      %p90 = por %p88, %p89
      %p91 = scmp.ne.s32.totalorder %s80, %s83
      %p92 = scmp.eq.s32.totalorder %s23, 1
      %p93 = por %p91, %p92
      %p94 = scmp.ne.s32.totalorder %s83, %s84
      %p95 = scmp.eq.s32.totalorder %s23, 0
      %p96 = por %p94, %p95
      %p97 = scmp.ne.s32.totalorder %s83, %s84
      %p98 = scmp.eq.s32.totalorder %s24, 1
      %p99 = por %p97, %p98
      %p101 = scmp.ne.s32.totalorder %s84, %s100
      %p102 = scmp.eq.s32.totalorder %s24, 0
      %p103 = por %p101, %p102
      %p104 = scmp.le.s32.totalorder 1, %s18
      %p105 = scmp.lt.s32.totalorder %s18, 3
      %p106 = pnand %p104, %p105
      %p107 = pneg %p106
      // Predicated region
      $region9: #{df_detector_forward.1} parent=5 // pred_check
        _
      $region10: #{df_detector_forward.1} parent=5 // pred_check_branch
        %109 = sbr.rel (%p106) target = $region12
      $region11: #{df_detector_forward.1} parent=5 // pred_region
        %s110 = ssub.s32 %s18, 1
      $region12: #{df_detector_forward.1} parent=5 // pred_fallthru
        _
      %p111 = scmp.lt.s32.totalorder %s18, 2
      // Predicated region
      $region13: #{df_detector_forward.1} parent=5 // pred_check
        %p112 = pneg %p111
      $region14: #{df_detector_forward.1} parent=5 // pred_check_branch
        %114 = sbr.rel (%p112) target = $region16
      $region15: #{df_detector_forward.1} parent=5 // pred_region
        // Predicated region
        $region17: #{df_detector_forward.1} parent=15 // pred_check
          %p115 = pneg %p38
        $region18: #{df_detector_forward.1} parent=15 // pred_check_branch
          %117 = sbr.rel (%p115) target = $region20
        $region19: #{df_detector_forward.1} parent=15 // pred_region
          %s118 = sand.u32 %s28, 1
          %s119 = scalar_lea.sflag [#allocation3], %s118
          %s120 = sand.u32 %s28, 1
          %s121 = smul.addr %s120, 64
          %s122 = scalar_lea.vmem [#allocation2], %s121
          %124 = vsyncadd %s119, 0
          %s125 = smul.addr %s18, 8
          %s126 = smul.addr %s125, 8
          %s127 = scalar_lea.hbm %s0, %s126
          %s128 = sshll.u32 %s127, 4
          %s129 = int_to_ptr.hbm [resolvable:$true] %s128
          %s130 = sshll.u32 %s122, 4
          %s131 = int_to_ptr.vmem [resolvable:$true] %s130
          %136 = dma.hbm_to_vmem [thread:$0]  %s129, 1024, %s131, %s119, 128, 128, 8
        $region20: #{df_detector_forward.1} parent=15 // pred_fallthru
          _
      $region16: #{df_detector_forward.1} parent=5 // pred_fallthru
        _
      %p137 = scmp.le.s32.totalorder 1, %s18
      %p138 = scmp.lt.s32.totalorder %s18, 3
      %p139 = pnand %p137, %p138
      %p140 = pneg %p139
      // Predicated region
      $region21: #{df_detector_forward.1} parent=5 // pred_check
        _
      $region22: #{df_detector_forward.1} parent=5 // pred_check_branch
        %142 = sbr.rel (%p139) target = $region24
      $region23: #{df_detector_forward.1} parent=5 // pred_region
        %s143 = ssub.s32 %s18, 1
        %s144 = sand.u32 %s31, 1
        %s145 = scalar_lea.sflag [#allocation3], %s144
        %s146 = sand.u32 %s31, 1
        %s147 = smul.addr %s146, 64
        %s148 = scalar_lea.vmem [#allocation2], %s147
        // Predicated region
        $region25: #{df_detector_forward.1} parent=23 // pred_check
          %p149 = pneg %p44
        $region26: #{df_detector_forward.1} parent=23 // pred_check_branch
          %151 = sbr.rel (%p149) target = $region28
        $region27: #{df_detector_forward.1} parent=23 // pred_region
          %153 = dma.done %s145, 1024
        $region28: #{df_detector_forward.1} parent=23 // pred_fallthru
          _
        %s154 = sand.u32 %s31, 1
        %s155 = scalar_lea.sflag [#allocation3], %s154
        %s156 = sand.u32 %s31, 1
        %s157 = smul.addr %s156, 64
        %s158 = scalar_lea.vmem [#allocation2], %s157
        %p159 = pneg %p44
        %p160 = pneg %p41
        %p161 = pneg %p70
        %p162 = pneg %p67
        %s163 = sand.u32 %s57, 1
        %s164 = scalar_lea.sflag [#allocation4], %s163
        %s165 = sand.u32 %s57, 1
        %s166 = smul.addr %s165, 16
        %s167 = scalar_lea.vmem [#allocation5], %s166
        %p168 = pneg %p96
        %p169 = pneg %p93
        %s170 = sand.u32 %s83, 1
        %s171 = scalar_lea.sflag [#allocation7], %s170
        %s172 = sand.u32 %s83, 1
        %s173 = smul.addr %s172, 16
        %s174 = scalar_lea.vmem [#allocation6], %s173
        %v175 = vld [vmem:[%s148] sm:$0xff]
        %v176 = vld [vmem:[%s148 + $0x8] sm:$0xff]
        %v177 = vld [vmem:[%s148 + $0x10] sm:$0xff]
        %v178 = vld [vmem:[%s148 + $0x18] sm:$0xff]
        %v179 = vld [vmem:[%s148 + $0x20] sm:$0xff]
        %v180 = vld [vmem:[%s148 + $0x28] sm:$0xff]
        %v181 = vld [vmem:[%s148 + $0x30] sm:$0xff]
        %v182 = vld [vmem:[%s148 + $0x38] sm:$0xff]
        %v183 = vlaneseq
        %v184 = vand.u32 %v183, 127
        %vm185 = vcmp.lt.s32.totalorder %v184, 0
        %v186 = vsub.s32 0, %v184
        %v187 = vsel %vm185, %v186, %v184
        %v188 = vshrl.u32 %v187, 1
        %v189 = vand.u32 %v187, 1
        %v190 = vsub.s32 0, %v189
        %v191 = vsel %vm185, %v190, %v189
        %vm192 = vcmp.ne.s32.totalorder %v191, 0
        %vm193 = vcmp.lt.s32.totalorder %v191, 0
        %vm194 = vmand %vm193, %vm192
        %v195 = vadd.s32 %v191, 2
        %v196 = vsel %vm194, %v195, %v191
        %vm197 = vcmp.eq.s32.totalorder %v196, 0
        %206 = vrot.lane.b32.xlu0 %v175, 127
        %v207 = vpop.permute.xlu0 %206
        %208 = vrot.lane.b32.xlu0 %v176, 127
        %v209 = vpop.permute.xlu0 %208
        %210 = vrot.lane.b32.xlu0 %v177, 127
        %v211 = vpop.permute.xlu0 %210
        %212 = vrot.lane.b32.xlu0 %v178, 127
        %v213 = vpop.permute.xlu0 %212
        %214 = vrot.lane.b32.xlu0 %v179, 127
        %v215 = vpop.permute.xlu0 %214
        %216 = vrot.lane.b32.xlu0 %v180, 127
        %v217 = vpop.permute.xlu0 %216
        %218 = vrot.lane.b32.xlu0 %v181, 127
        %v219 = vpop.permute.xlu0 %218
        %220 = vrot.lane.b32.xlu0 %v182, 127
        %v221 = vpop.permute.xlu0 %220
        %vm230 = vcmask 121856
        %v231 = vsel %vm230, %v207, %v175
        %v232 = vsel %vm230, %v209, %v176
        %v233 = vsel %vm230, %v211, %v177
        %v234 = vsel %vm230, %v213, %v178
        %v235 = vsel %vm230, %v215, %v179
        %v236 = vsel %vm230, %v217, %v180
        %v237 = vsel %vm230, %v219, %v181
        %v238 = vsel %vm230, %v221, %v182
        %239 = vrot.lane.b32.xlu0 %v175, 1
        %v240 = vpop.permute.xlu0 %239
        %241 = vrot.lane.b32.xlu0 %v176, 1
        %v242 = vpop.permute.xlu0 %241
        %243 = vrot.lane.b32.xlu0 %v177, 1
        %v244 = vpop.permute.xlu0 %243
        %245 = vrot.lane.b32.xlu0 %v178, 1
        %v246 = vpop.permute.xlu0 %245
        %247 = vrot.lane.b32.xlu0 %v179, 1
        %v248 = vpop.permute.xlu0 %247
        %249 = vrot.lane.b32.xlu0 %v180, 1
        %v250 = vpop.permute.xlu0 %249
        %251 = vrot.lane.b32.xlu0 %v181, 1
        %v252 = vpop.permute.xlu0 %251
        %253 = vrot.lane.b32.xlu0 %v182, 1
        %v254 = vpop.permute.xlu0 %253
        %vm263 = vcmask 7168
        %v264 = vsel %vm263, %v175, %v240
        %v265 = vsel %vm263, %v176, %v242
        %v266 = vsel %vm263, %v177, %v244
        %v267 = vsel %vm263, %v178, %v246
        %v268 = vsel %vm263, %v179, %v248
        %v269 = vsel %vm263, %v180, %v250
        %v270 = vsel %vm263, %v181, %v252
        %v271 = vsel %vm263, %v182, %v254
        %v272 = vsel %vm197, 1, 0
        %vm273 = vcmp.eq.s32.totalorder %v272, 1
        %v274 = vsel %vm273, %v231, %v264
        %v275 = vsel %vm273, %v232, %v265
        %v276 = vsel %vm273, %v233, %v266
        %v277 = vsel %vm273, %v234, %v267
        %v278 = vsel %vm273, %v235, %v268
        %v279 = vsel %vm273, %v236, %v269
        %v280 = vsel %vm273, %v237, %v270
        %v281 = vsel %vm273, %v238, %v271
        %v282 = vadd.f32 %v175, %v274
        %v283 = vadd.f32 %v176, %v275
        %v284 = vadd.f32 %v177, %v276
        %v285 = vadd.f32 %v178, %v277
        %v286 = vadd.f32 %v179, %v278
        %v287 = vadd.f32 %v180, %v279
        %v288 = vadd.f32 %v181, %v280
        %v289 = vadd.f32 %v182, %v281
        %298 = vrot.lane.b32.xlu0 %v282, 2
        %v299 = vpop.permute.xlu0 %298
        %300 = vrot.lane.b32.xlu0 %v283, 2
        %v301 = vpop.permute.xlu0 %300
        %302 = vrot.lane.b32.xlu0 %v284, 2
        %v303 = vpop.permute.xlu0 %302
        %304 = vrot.lane.b32.xlu0 %v285, 2
        %v305 = vpop.permute.xlu0 %304
        %306 = vrot.lane.b32.xlu0 %v286, 2
        %v307 = vpop.permute.xlu0 %306
        %308 = vrot.lane.b32.xlu0 %v287, 2
        %v309 = vpop.permute.xlu0 %308
        %310 = vrot.lane.b32.xlu0 %v288, 2
        %v311 = vpop.permute.xlu0 %310
        %312 = vrot.lane.b32.xlu0 %v289, 2
        %v313 = vpop.permute.xlu0 %312
        %vm322 = vcmask 15360
        %v323 = vsel %vm322, %v282, %v299
        %v324 = vsel %vm322, %v283, %v301
        %v325 = vsel %vm322, %v284, %v303
        %v326 = vsel %vm322, %v285, %v305
        %v327 = vsel %vm322, %v286, %v307
        %v328 = vsel %vm322, %v287, %v309
        %v329 = vsel %vm322, %v288, %v311
        %v330 = vsel %vm322, %v289, %v313
        %331 = vrot.lane.b32.xlu0 %v282, 126
        %v332 = vpop.permute.xlu0 %331
        %333 = vrot.lane.b32.xlu0 %v283, 126
        %v334 = vpop.permute.xlu0 %333
        %335 = vrot.lane.b32.xlu0 %v284, 126
        %v336 = vpop.permute.xlu0 %335
        %337 = vrot.lane.b32.xlu0 %v285, 126
        %v338 = vpop.permute.xlu0 %337
        %339 = vrot.lane.b32.xlu0 %v286, 126
        %v340 = vpop.permute.xlu0 %339
        %341 = vrot.lane.b32.xlu0 %v287, 126
        %v342 = vpop.permute.xlu0 %341
        %343 = vrot.lane.b32.xlu0 %v288, 126
        %v344 = vpop.permute.xlu0 %343
        %345 = vrot.lane.b32.xlu0 %v289, 126
        %v346 = vpop.permute.xlu0 %345
        %vm355 = vcmask 113664
        %v356 = vsel %vm355, %v332, %v282
        %v357 = vsel %vm355, %v334, %v283
        %v358 = vsel %vm355, %v336, %v284
        %v359 = vsel %vm355, %v338, %v285
        %v360 = vsel %vm355, %v340, %v286
        %v361 = vsel %vm355, %v342, %v287
        %v362 = vsel %vm355, %v344, %v288
        %v363 = vsel %vm355, %v346, %v289
        %v364 = vsel %vm273, %v323, %v356
        %v365 = vsel %vm273, %v324, %v357
        %v366 = vsel %vm273, %v325, %v358
        %v367 = vsel %vm273, %v326, %v359
        %v368 = vsel %vm273, %v327, %v360
        %v369 = vsel %vm273, %v328, %v361
        %v370 = vsel %vm273, %v329, %v362
        %v371 = vsel %vm273, %v330, %v363
        %v372 = vmul.f32 %v282, 0.375
        %v373 = vmul.f32 %v283, 0.375
        %v374 = vmul.f32 %v284, 0.375
        %v375 = vmul.f32 %v285, 0.375
        %v376 = vmul.f32 %v286, 0.375
        %v377 = vmul.f32 %v287, 0.375
        %v378 = vmul.f32 %v288, 0.375
        %v379 = vmul.f32 %v289, 0.375
        %v380 = vmul.f32 %v364, 0.125
        %v381 = vmul.f32 %v365, 0.125
        %v382 = vmul.f32 %v366, 0.125
        %v383 = vmul.f32 %v367, 0.125
        %v384 = vmul.f32 %v368, 0.125
        %v385 = vmul.f32 %v369, 0.125
        %v386 = vmul.f32 %v370, 0.125
        %v387 = vmul.f32 %v371, 0.125
        %v388 = vadd.f32 %v372, %v380
        %v389 = vadd.f32 %v373, %v381
        %v390 = vadd.f32 %v374, %v382
        %v391 = vadd.f32 %v375, %v383
        %v392 = vadd.f32 %v376, %v384
        %v393 = vadd.f32 %v377, %v385
        %v394 = vadd.f32 %v378, %v386
        %v395 = vadd.f32 %v379, %v387
        %v396 = vlaneseq
        %v397 = vshrl.u32 %v396, 7
        %v398 = vadd.s32 %v397, 8
        %vm399 = vcmp.lt.s32.totalorder %v397, 0
        %v400 = vsub.s32 0, %v397
        %v401 = vsel %vm399, %v400, %v397
        %v402 = vshrl.u32 %v401, 1
        %v403 = vand.u32 %v401, 1
        %v404 = vsub.s32 0, %v403
        %v405 = vsel %vm399, %v404, %v403
        %vm406 = vcmp.lt.s32.totalorder %v398, 0
        %v407 = vsub.s32 0, %v398
        %v408 = vsel %vm406, %v407, %v398
        %v409 = vshrl.u32 %v408, 1
        %v410 = vand.u32 %v408, 1
        %v411 = vsub.s32 0, %v410
        %v412 = vsel %vm406, %v411, %v410
        %vm413 = vcmp.ne.s32.totalorder %v405, 0
        %vm414 = vcmp.ne.s32.totalorder %v412, 0
        %vm415 = vcmp.lt.s32.totalorder %v405, 0
        %vm416 = vcmp.lt.s32.totalorder %v412, 0
        %vm417 = vmand %vm415, %vm413
        %vm418 = vmand %vm416, %vm414
        %v419 = vadd.s32 %v405, 2
        %v420 = vadd.s32 %v412, 2
        %v421 = vsel %vm417, %v419, %v405
        %v422 = vsel %vm418, %v420, %v412
        %vm423 = vcmp.eq.s32.totalorder %v421, 0
        %vm424 = vcmp.eq.s32.totalorder %v422, 0
        %vm433 = vcmask 1046528
        %v434 = vrot.slane %v388, 1
        %v435 = vrot.slane %v389, 1
        %v436 = vsel %vm433, %v434, %v435
        %v437 = vrot.slane %v390, 1
        %v438 = vrot.slane %v391, 1
        %v439 = vsel %vm433, %v437, %v438
        %v440 = vrot.slane %v392, 1
        %v441 = vrot.slane %v393, 1
        %v442 = vsel %vm433, %v440, %v441
        %v443 = vrot.slane %v394, 1
        %v444 = vrot.slane %v395, 1
        %v445 = vsel %vm433, %v443, %v444
        %v454 = vsel %vm433, %v435, %v389
        %v455 = vsel %vm433, %v438, %v391
        %v456 = vsel %vm433, %v441, %v393
        %v457 = vsel %vm433, %v444, %v395
        %vm458 = vcmask 1040384
        %v459 = vrot.slane %v388, 7
        %v460 = vrot.slane %v389, 7
        %v461 = vsel %vm458, %v459, %v460
        %v462 = vrot.slane %v390, 7
        %v463 = vrot.slane %v391, 7
        %v464 = vsel %vm458, %v462, %v463
        %v465 = vrot.slane %v392, 7
        %v466 = vrot.slane %v393, 7
        %v467 = vsel %vm458, %v465, %v466
        %v468 = vrot.slane %v394, 7
        %v469 = vrot.slane %v395, 7
        %v470 = vsel %vm458, %v468, %v469
        %v479 = vsel %vm458, %v388, %v459
        %v480 = vsel %vm458, %v390, %v462
        %v481 = vsel %vm458, %v392, %v465
        %v482 = vsel %vm458, %v394, %v468
        %v483 = vsel %vm423, 1, 0
        %v484 = vsel %vm424, 1, 0
        %vm485 = vcmp.eq.s32.totalorder %v483, 1
        %vm486 = vcmp.eq.s32.totalorder %v484, 1
        %v487 = vsel %vm485, %v436, %v479
        %v488 = vsel %vm486, %v454, %v461
        %v489 = vsel %vm485, %v439, %v480
        %v490 = vsel %vm486, %v455, %v464
        %v491 = vsel %vm485, %v442, %v481
        %v492 = vsel %vm486, %v456, %v467
        %v493 = vsel %vm485, %v445, %v482
        %v494 = vsel %vm486, %v457, %v470
        %v495 = vadd.f32 %v388, %v487
        %v496 = vadd.f32 %v389, %v488
        %v497 = vadd.f32 %v390, %v489
        %v498 = vadd.f32 %v391, %v490
        %v499 = vadd.f32 %v392, %v491
        %v500 = vadd.f32 %v393, %v492
        %v501 = vadd.f32 %v394, %v493
        %v502 = vadd.f32 %v395, %v494
        %vm511 = vcmask 1041408
        %v512 = vrot.slane %v495, 6
        %v513 = vrot.slane %v496, 6
        %v514 = vsel %vm511, %v512, %v513
        %v515 = vrot.slane %v497, 6
        %v516 = vrot.slane %v498, 6
        %v517 = vsel %vm511, %v515, %v516
        %v518 = vrot.slane %v499, 6
        %v519 = vrot.slane %v500, 6
        %v520 = vsel %vm511, %v518, %v519
        %v521 = vrot.slane %v501, 6
        %v522 = vrot.slane %v502, 6
        %v523 = vsel %vm511, %v521, %v522
        %v532 = vsel %vm511, %v495, %v512
        %v533 = vsel %vm511, %v497, %v515
        %v534 = vsel %vm511, %v499, %v518
        %v535 = vsel %vm511, %v501, %v521
        %vm536 = vcmask 1045504
        %v537 = vrot.slane %v495, 2
        %v538 = vrot.slane %v496, 2
        %v539 = vsel %vm536, %v537, %v538
        %v540 = vrot.slane %v497, 2
        %v541 = vrot.slane %v498, 2
        %v542 = vsel %vm536, %v540, %v541
        %v543 = vrot.slane %v499, 2
        %v544 = vrot.slane %v500, 2
        %v545 = vsel %vm536, %v543, %v544
        %v546 = vrot.slane %v501, 2
        %v547 = vrot.slane %v502, 2
        %v548 = vsel %vm536, %v546, %v547
        %v557 = vsel %vm536, %v538, %v496
        %v558 = vsel %vm536, %v541, %v498
        %v559 = vsel %vm536, %v544, %v500
        %v560 = vsel %vm536, %v547, %v502
        %v561 = vsel %vm485, %v532, %v539
        %v562 = vsel %vm486, %v514, %v557
        %v563 = vsel %vm485, %v533, %v542
        %v564 = vsel %vm486, %v517, %v558
        %v565 = vsel %vm485, %v534, %v545
        %v566 = vsel %vm486, %v520, %v559
        %v567 = vsel %vm485, %v535, %v548
        %v568 = vsel %vm486, %v523, %v560
        %v569 = vmul.f32 %v495, 0.375
        %v570 = vmul.f32 %v496, 0.375
        %v571 = vmul.f32 %v497, 0.375
        %v572 = vmul.f32 %v498, 0.375
        %v573 = vmul.f32 %v499, 0.375
        %v574 = vmul.f32 %v500, 0.375
        %v575 = vmul.f32 %v501, 0.375
        %v576 = vmul.f32 %v502, 0.375
        %v577 = vmul.f32 %v561, 0.125
        %v578 = vmul.f32 %v562, 0.125
        %v579 = vmul.f32 %v563, 0.125
        %v580 = vmul.f32 %v564, 0.125
        %v581 = vmul.f32 %v565, 0.125
        %v582 = vmul.f32 %v566, 0.125
        %v583 = vmul.f32 %v567, 0.125
        %v584 = vmul.f32 %v568, 0.125
        %v585 = vadd.f32 %v569, %v577
        %v586 = vadd.f32 %v570, %v578
        %v587 = vadd.f32 %v571, %v579
        %v588 = vadd.f32 %v572, %v580
        %v589 = vadd.f32 %v573, %v581
        %v590 = vadd.f32 %v574, %v582
        %v591 = vadd.f32 %v575, %v583
        %v592 = vadd.f32 %v576, %v584
        %v593 = vsub.f32 %v175, %v585
        %v594 = vsub.f32 %v176, %v586
        %v595 = vsub.f32 %v177, %v587
        %v596 = vsub.f32 %v178, %v588
        %v597 = vsub.f32 %v179, %v589
        %v598 = vsub.f32 %v180, %v590
        %v599 = vsub.f32 %v181, %v591
        %v600 = vsub.f32 %v182, %v592
        %v601 = vand.u32 2147483647, %v593
        %v602 = vand.u32 2147483647, %v594
        %v603 = vand.u32 2147483647, %v595
        %v604 = vand.u32 2147483647, %v596
        %v605 = vand.u32 2147483647, %v597
        %v606 = vand.u32 2147483647, %v598
        %v607 = vand.u32 2147483647, %v599
        %v608 = vand.u32 2147483647, %v600
        %vm609 = vcmask 130048
        %v610 = vsel %vm609, %v601, 0.0
        %v611 = vsel %vm609, %v603, 0.0
        %v612 = vadd.f32 %v610, %v611
        %v613 = vsel %vm609, %v605, 0.0
        %v614 = vadd.f32 %v612, %v613
        %v615 = vsel %vm609, %v607, 0.0
        %v616 = vadd.f32 %v614, %v615
        %v617 = vsel %vm609, %v602, 0.0
        %v618 = vsel %vm609, %v604, 0.0
        %v619 = vadd.f32 %v617, %v618
        %v620 = vsel %vm609, %v606, 0.0
        %v621 = vadd.f32 %v619, %v620
        %v622 = vsel %vm609, %v608, 0.0
        %v623 = vadd.f32 %v621, %v622
        %624 = vst.msk [vmem:[%s167] sm:$0xff] %vm609, %v616
        %625 = vst.msk [vmem:[%s167 + $0x8] sm:$0xff] %vm609, %v623
        %v626 = vsel %vm609, %v616, inf
        %627 = vmin.xlane.f32.xlu0 %v626
        %v628 = vpop.xlane.xlu0 %627
        %v629 = vsel %vm609, %v623, inf
        %630 = vmin.xlane.f32.xlu0 %v629
        %v631 = vpop.xlane.xlu0 %630
        %v632 = vmin.f32 %v628, %v631
        %v633 = vrot.slane %v632, 4
        %v634 = vmin.f32 %v632, %v633
        %v635 = vrot.slane %v634, 2
        %v636 = vmin.f32 %v634, %v635
        %v637 = vrot.slane %v636, 1
        %v638 = vmin.f32 %v636, %v637
        %v639 = vsel %vm609, %v616, -inf
        %640 = vmax.xlane.f32.xlu0 %v639
        %v641 = vpop.xlane.xlu0 %640
        %v642 = vsel %vm609, %v623, -inf
        %643 = vmax.xlane.f32.xlu0 %v642
        %v644 = vpop.xlane.xlu0 %643
        %v645 = vmax.f32 %v641, %v644
        %v646 = vrot.slane %v645, 4
        %v647 = vmax.f32 %v645, %v646
        %v648 = vrot.slane %v647, 2
        %v649 = vmax.f32 %v647, %v648
        %v650 = vrot.slane %v649, 1
        %v651 = vmax.f32 %v649, %v650
        %v652 = vsub.f32 %v651, %v638
        %v653 = vadd.f32 %v652, 1e-08
        %v654 = vrcp.pop %v653
        %v655 = vmul.f32 %v653, %v654
        %v656 = vsub.f32 1.0, %v655
        %v657 = vmul.f32 %v654, %v656
        %v658 = vadd.f32 %v654, %v657
        %vm659 = vweird.f32 %v653
        %vm660 = vweird.f32 %v654
        %vm661 = vmor %vm659, %vm660
        %v662 = vsel %vm661, %v654, %v658
        %v663 = vand.u32 2147483647, %v653
        %vm664 = vcmp.eq.f32.partialorder %v663, 8.507059e+37
        %v665 = vand.u32 %v653, 2147483648
        %v666 = vor.u32 1.1754944e-38, %v665
        %v667 = vsel %vm664, %v666, %v662
        %v668 = vmul.f32 1.0, %v667
        %v669 = vsub.f32 %v616, %v638
        %v670 = vsub.f32 %v623, %v638
        %v671 = vmul.f32 %v669, %v668
        %v672 = vmul.f32 %v670, %v668
        %v673 = vmul.f32 %v671, %v671
        %v674 = vmul.f32 %v672, %v672
        %vm675 = vcmp.gt.f32.partialorder %v673, 0.1
        %vm676 = vcmp.gt.f32.partialorder %v674, 0.1
        %v677 = vsel %vm675, 1, 0
        %v678 = vsel %vm676, 1, 0
        %v679 = vcvt.s32.f32 %v677
        %v680 = vcvt.s32.f32 %v678
        %v681 = vmul.f32 %v673, 15.0
        %v682 = vmul.f32 %v674, 15.0
        %v683 = vround.ne.pseudo %v681
        %v684 = vround.ne.pseudo %v682
        %v685 = vmax.f32 %v683, 0.0
        %v686 = vmax.f32 %v684, 0.0
        %v687 = vmul.f32 %v685, %v679
        %v688 = vmul.f32 %v686, %v680
        %v689 = vadd.f32 %v687, 1.0
        %v690 = vadd.f32 %v688, 1.0
        %691 = vst.msk [vmem:[%s174] sm:$0xff] %vm609, %v689
        %692 = vst.msk [vmem:[%s174 + $0x8] sm:$0xff] %vm609, %v690
        %s693 = sand.u32 %s57, 1
        %s694 = scalar_lea.sflag [#allocation4], %s693
        %s695 = sand.u32 %s57, 1
        %s696 = smul.addr %s695, 16
        %s697 = scalar_lea.vmem [#allocation5], %s696
        %s698 = sand.u32 %s83, 1
        %s699 = scalar_lea.sflag [#allocation7], %s698
        %s700 = sand.u32 %s83, 1
        %s701 = smul.addr %s700, 16
        %s702 = scalar_lea.vmem [#allocation6], %s701
        // Predicated region
        $region29: #{df_detector_forward.1} parent=23 // pred_check
          %p703 = pneg %p67
        $region30: #{df_detector_forward.1} parent=23 // pred_check_branch
          %705 = sbr.rel (%p703) target = $region32
        $region31: #{df_detector_forward.1} parent=23 // pred_region
          %707 = vsyncadd %s694, 0
          %s708 = smul.addr %s23, 2
          %s709 = smul.addr %s708, 8
          %s710 = scalar_lea.hbm %s1, %s709
          %s711 = sshll.u32 %s697, 4
          %s712 = int_to_ptr.vmem [resolvable:$true] %s711
          %s713 = sshll.u32 %s710, 4
          %s714 = int_to_ptr.hbm [resolvable:$true] %s713
          %719 = dma.vmem_to_hbm [thread:$0]  %s712, 256, %s714, %s694, 128, 128, 8
        $region32: #{df_detector_forward.1} parent=23 // pred_fallthru
          _
        // Predicated region
        $region33: #{df_detector_forward.1} parent=23 // pred_check
          %p720 = pneg %p93
        $region34: #{df_detector_forward.1} parent=23 // pred_check_branch
          %722 = sbr.rel (%p720) target = $region36
        $region35: #{df_detector_forward.1} parent=23 // pred_region
          %724 = vsyncadd %s699, 0
          %s725 = smul.addr %s23, 2
          %s726 = smul.addr %s725, 8
          %s727 = scalar_lea.hbm %s2, %s726
          %s728 = sshll.u32 %s702, 4
          %s729 = int_to_ptr.vmem [resolvable:$true] %s728
          %s730 = sshll.u32 %s727, 4
          %s731 = int_to_ptr.hbm [resolvable:$true] %s730
          %736 = dma.vmem_to_hbm [thread:$0]  %s729, 256, %s731, %s699, 128, 128, 8
        $region36: #{df_detector_forward.1} parent=23 // pred_fallthru
          _
      $region24: #{df_detector_forward.1} parent=5 // pred_fallthru
        _
      %p737 = scmp.le.s32.totalorder 2, %s18
      // Predicated region
      $region37: #{df_detector_forward.1} parent=5 // pred_check
        %p738 = pneg %p737
      $region38: #{df_detector_forward.1} parent=5 // pred_check_branch
        %740 = sbr.rel (%p738) target = $region40
      $region39: #{df_detector_forward.1} parent=5 // pred_region
        %s741 = ssub.s32 %s18, 2
        // Predicated region
        $region41: #{df_detector_forward.1} parent=39 // pred_check
          %p742 = pneg %p73
        $region42: #{df_detector_forward.1} parent=39 // pred_check_branch
          %744 = sbr.rel (%p742) target = $region44
        $region43: #{df_detector_forward.1} parent=39 // pred_region
          %s745 = sand.u32 %s58, 1
          %s746 = scalar_lea.sflag [#allocation4], %s745
          %s747 = sand.u32 %s58, 1
          %s748 = smul.addr %s747, 16
          %s749 = scalar_lea.vmem [#allocation5], %s748
          %751 = dma.done %s746, 256
        $region44: #{df_detector_forward.1} parent=39 // pred_fallthru
          _
        // Predicated region
        $region45: #{df_detector_forward.1} parent=39 // pred_check
          %p752 = pneg %p99
        $region46: #{df_detector_forward.1} parent=39 // pred_check_branch
          %754 = sbr.rel (%p752) target = $region48
        $region47: #{df_detector_forward.1} parent=39 // pred_region
          %s755 = sand.u32 %s84, 1
          %s756 = scalar_lea.sflag [#allocation7], %s755
          %s757 = sand.u32 %s84, 1
          %s758 = smul.addr %s757, 16
          %s759 = scalar_lea.vmem [#allocation6], %s758
          %761 = dma.done %s756, 256
        $region48: #{df_detector_forward.1} parent=39 // pred_fallthru
          _
      $region40: #{df_detector_forward.1} parent=5 // pred_fallthru
        _
    $region6: #{df_detector_forward.1} parent=1 // loop_footer
      %s22 = sadd.s32 1, %s18
    $region7: #{df_detector_forward.1} parent=1 // loop_footer_branch
      %17 = sbr.rel target = $region3
    $region8: #{df_detector_forward.1} parent=1 // loop_exit
      _
    %762 = vsyncpa [#allocation3], 1
    %s763 = scalar_lea.sflag [#allocation3], 1
    %764 = vsyncpa %s763, 1
    %765 = vsyncpa [#allocation4], 1
    %s766 = scalar_lea.sflag [#allocation4], 1
    %767 = vsyncpa %s766, 1
    %768 = vsyncpa [#allocation7], 1
    %s769 = scalar_lea.sflag [#allocation7], 1
    %770 = vsyncpa %s769, 1

</llo_original>
